<compile_context>
chip_gen: v6e
topology: v6e:2x2x1
jax: 0.10.0
libtpu: 0.0.40
codegen_flags: <defaults>
</compile_context>

<pallas_src>
import functools

import jax
import jax.numpy as jnp
from jax import lax
from jax.experimental import pallas as pl
from jax.experimental.pallas import tpu as pltpu


def _dt_loss_kernel(x_ref, w_ref, out_ref, acc_ref):
    """x_ref: (K, tile) diff patches.  w_ref: (C_out, K) conv weight.
    acc_ref: (C_out, tile) running elementwise sum of squared conv-of-diff.
    out_ref: (1, 1) per-partial sum, written only on the last inner step."""
    @pl.when(pl.program_id(1) == 0)
    def _():
        acc_ref[...] = jnp.zeros_like(acc_ref)

    d = jnp.dot(w_ref[...], x_ref[...], preferred_element_type=jnp.float32)
    acc_ref[...] += d * d

    @pl.when(pl.program_id(1) == pl.num_programs(1) - 1)
    def _():
        out_ref[...] = jnp.sum(acc_ref[...], keepdims=True)


def _im2col_km(x, kh, kw, pad):
    """(N, C, H, W) -> (C*kh*kw, N*H*W) patches; K index = c*kh*kw + i*kw + j."""
    n, c, h, w = x.shape
    xp = jnp.pad(x, ((0, 0), (0, 0), (pad, pad), (pad, pad)))
    cols = jnp.stack(
        [xp[:, :, i:i + h, j:j + w] for i in range(kh) for j in range(kw)],
        axis=2)                               # (N, C, kh*kw, H, W)
    cols = cols.transpose(1, 2, 0, 3, 4)      # (C, kh*kw, N, H, W)
    return cols.reshape(c * kh * kw, n * h * w)


@functools.partial(jax.jit, static_argnames=("tile_m", "num_partials"))
def distance_transform_loss(probs, labels, weight, bias, *,
                            tile_m=2048, num_partials=2):
    n, _, h, w = probs.shape
    c_out, c_in, kh, kw = weight.shape
    pad = kh // 2
    k = c_in * kh * kw
    del bias  # (W.p + b) - (W.l + b) == W.(p - l): the bias cancels exactly.

    # Conv of the difference (single input stream, single matmul).
    diff = probs.astype(jnp.float32) - labels.astype(jnp.float32)
    x_km = _im2col_km(diff, kh, kw, pad)          # (K, M), M lane-dense
    # TODO(synk): fuse the im2col into the kernel (stream haloed image tiles)
    # to remove the kh*kw HBM inflation of the patch matrix on large H, W.

    m = x_km.shape[1]
    # Big lane-dense tile, but never larger than one partial's share of M.
    tile = max(128, min(pl.cdiv(tile_m, 128) * 128,
                        pl.cdiv(m, num_partials * 128) * 128))
    inner = pl.cdiv(m, num_partials * tile)
    m_pad = num_partials * inner * tile
    if m_pad != m:
        # Zero diff columns convolve to zero (no bias) -> contribute nothing.
        x_km = jnp.pad(x_km, ((0, 0), (0, m_pad - m)))

    w2 = weight.reshape(c_out, k).astype(jnp.float32)   # (C_out, K)

    cost = pl.CostEstimate(
        flops=2 * m_pad * k * c_out + 2 * c_out * m_pad,
        transcendentals=0,
        bytes_accessed=4 * (k * m_pad + c_out * k + num_partials))

    partials = pl.pallas_call(
        _dt_loss_kernel,
        out_shape=jax.ShapeDtypeStruct((num_partials, 1, 1), jnp.float32),
        grid_spec=pltpu.PrefetchScalarGridSpec(
            num_scalar_prefetch=0,
            grid=(num_partials, inner),
            in_specs=[
                pl.BlockSpec((k, tile), lambda p, j: (0, p * inner + j)),
                pl.BlockSpec((c_out, k), lambda p, j: (0, 0)),
            ],
            out_specs=pl.BlockSpec((None, 1, 1), lambda p, j: (p, 0, 0)),
            scratch_shapes=[pltpu.VMEM((c_out, tile), jnp.float32)],
        ),
        compiler_params=pltpu.CompilerParams(
            dimension_semantics=("parallel", "arbitrary")),
        cost_estimate=cost,
    )(x_km, w2)

    total = jnp.sum(partials)
    denom = jnp.float32(n * c_out * h * w)   # MSE mean over all output elems
    return (total / denom).astype(jnp.float32)


def _reference_loss(probs, labels, weight, bias):
    dn = ("NCHW", "OIHW", "NCHW")
    p_dt = lax.conv_general_dilated(probs, weight, (1, 1), "SAME",
                                    dimension_numbers=dn) + bias[None, :, None, None]
    l_dt = lax.conv_general_dilated(labels, weight, (1, 1), "SAME",
                                    dimension_numbers=dn) + bias[None, :, None, None]
    return jnp.mean((p_dt - l_dt) ** 2).astype(jnp.float32)


if __name__ == "__main__":
    # Small shapes consistent with the module's forward: NCHW inputs.
    N, C_IN, H, W = 2, 4, 16, 16
    C_OUT, KH, KW = 4, 3, 3

    key = jax.random.PRNGKey(0)
    k_p, k_l, k_w, k_b = jax.random.split(key, 4)

    probs = jax.nn.softmax(
        jax.random.normal(k_p, (N, C_IN, H, W), jnp.float32), axis=1)
    labels = jax.nn.one_hot(
        jax.random.randint(k_l, (N, H, W), 0, C_IN), C_IN,
        dtype=jnp.float32).transpose(0, 3, 1, 2)

    # Deterministic Conv2d-style init (uniform in +/- 1/sqrt(fan_in)).
    fan_in = C_IN * KH * KW
    bound = 1.0 / (fan_in ** 0.5)
    weight = jax.random.uniform(k_w, (C_OUT, C_IN, KH, KW), jnp.float32,
                                -bound, bound)
    bias = jax.random.uniform(k_b, (C_OUT,), jnp.float32, -bound, bound)

    loss = distance_transform_loss(probs, labels, weight, bias)
    loss = jax.block_until_ready(loss)

    ref = jax.block_until_ready(_reference_loss(probs, labels, weight, bias))
    assert jnp.allclose(loss, ref, rtol=1e-4, atol=1e-5), (loss, ref)

    print("KERNEL_OK")
</pallas_src>

<mosaic_0001>
module attributes {stable_mosaic.version = 11 : i64} {
  func.func @_dt_loss_kernel(%arg0: i32, %arg1: i32, %arg2: memref<36x256xf32, #tpu.memory_space<vmem>>, %arg3: memref<4x36xf32, #tpu.memory_space<vmem>>, %arg4: memref<1x1x1xf32, #tpu.memory_space<vmem>>, %arg5: memref<4x256xf32, #tpu.memory_space<vmem>>) attributes {dimension_semantics = [#tpu.dimension_semantics<parallel>, #tpu.dimension_semantics<arbitrary>], iteration_bounds = array<i64: 2, 1>, scalar_prefetch = 0 : i64, scratch_operands = 1 : i64, tpu.core_type = #tpu.core_type<tc>, window_params = [{transform_indices = @transform_0, window_bounds = array<i64: 36, 256>}, {pipeline_mode = #tpu.pipeline_mode<synchronous>, transform_indices = @transform_1, window_bounds = array<i64: 4, 36>}, {transform_indices = @transform_2, window_bounds = array<i64: 1, 1, 1>}]} {
    %c0_i32 = arith.constant 0 : i32
    %0 = arith.cmpi eq, %arg1, %c0_i32 : i32
    %1 = arith.extui %0 : i1 to i32
    %c0_i32_0 = arith.constant 0 : i32
    %2 = arith.cmpi ne, %1, %c0_i32_0 : i32
    scf.if %2 {
      %cst_10 = arith.constant 0.000000e+00 : f32
      %13 = vector.broadcast %cst_10 : f32 to vector<4x256xf32>
      %c0_11 = arith.constant 0 : index
      %c0_12 = arith.constant 0 : index
      %14 = vector.load %arg5[%c0_11, %c0_12] : memref<4x256xf32, #tpu.memory_space<vmem>>, vector<4x256xf32>
      tpu.vector_store %arg5[%c0_11, %c0_12], %13 {strides = array<i32>} : memref<4x256xf32, #tpu.memory_space<vmem>>, vector<4x256xf32>,
    } else {
    }
    %c0 = arith.constant 0 : index
    %c0_1 = arith.constant 0 : index
    %3 = vector.load %arg3[%c0, %c0_1] : memref<4x36xf32, #tpu.memory_space<vmem>>, vector<4x36xf32>
    %c0_2 = arith.constant 0 : index
    %c0_3 = arith.constant 0 : index
    %4 = vector.load %arg2[%c0_2, %c0_3] : memref<36x256xf32, #tpu.memory_space<vmem>>, vector<36x256xf32>
    %cst = arith.constant dense<0.000000e+00> : vector<4x256xf32>
    %5 = tpu.matmul %3, %4, %cst {dimension_numbers = #tpu.dot_dimension_numbers<[1], [0], [0], [1], [0, 0, 1, 1], [], []>} : vector<4x36xf32>, vector<36x256xf32>, vector<4x256xf32> -> vector<4x256xf32>
    %c0_4 = arith.constant 0 : index
    %c0_5 = arith.constant 0 : index
    %6 = vector.load %arg5[%c0_4, %c0_5] : memref<4x256xf32, #tpu.memory_space<vmem>>, vector<4x256xf32>
    %7 = arith.mulf %5, %5 : vector<4x256xf32>
    %8 = arith.addf %6, %7 : vector<4x256xf32>
    %c0_6 = arith.constant 0 : index
    %c0_7 = arith.constant 0 : index
    %9 = vector.load %arg5[%c0_6, %c0_7] : memref<4x256xf32, #tpu.memory_space<vmem>>, vector<4x256xf32>
    tpu.vector_store %arg5[%c0_6, %c0_7], %8 {strides = array<i32>} : memref<4x256xf32, #tpu.memory_space<vmem>>, vector<4x256xf32>,
    %c0_i32_8 = arith.constant 0 : i32
    %10 = arith.cmpi eq, %arg1, %c0_i32_8 : i32
    %11 = arith.extui %10 : i1 to i32
    %c0_i32_9 = arith.constant 0 : i32
    %12 = arith.cmpi ne, %11, %c0_i32_9 : i32
    scf.if %12 {
      %c0_10 = arith.constant 0 : index
      %c0_11 = arith.constant 0 : index
      %13 = vector.load %arg5[%c0_10, %c0_11] : memref<4x256xf32, #tpu.memory_space<vmem>>, vector<4x256xf32>
      %14 = vector.shape_cast %13 : vector<4x256xf32> to vector<1x4x256xf32>
      %cst_12 = arith.constant dense<0.000000e+00> : vector<1xf32>
      %15 = vector.multi_reduction <add>, %14, %cst_12 [1, 2] : vector<1x4x256xf32> to vector<1xf32>
      %16 = vector.shape_cast %15 : vector<1xf32> to vector<1x1x1xf32>
      %17 = vector.extract %16[0, 0, 0] : f32 from vector<1x1x1xf32>
      %18 = vector.broadcast %17 : f32 to vector<1x1xf32>
      %c0_13 = arith.constant 0 : index
      %c0_14 = arith.constant 0 : index
      %c0_15 = arith.constant 0 : index
      %19 = vector.load %arg4[%c0_13, %c0_14, %c0_15] : memref<1x1x1xf32, #tpu.memory_space<vmem>>, vector<1x1x1xf32>
      %20 = vector.shape_cast %19 : vector<1x1x1xf32> to vector<1x1xf32>
      %21 = vector.shape_cast %18 : vector<1x1xf32> to vector<1x1x1xf32>
      tpu.vector_store %arg4[%c0_13, %c0_14, %c0_15], %21 {strides = array<i32>} : memref<1x1x1xf32, #tpu.memory_space<vmem>>, vector<1x1x1xf32>,
    } else {
    }
    return
  }
  func.func @transform_0(%arg0: i32, %arg1: i32) -> (i32, i32) {
    %c1_i32 = arith.constant 1 : i32
    %0 = arith.muli %arg0, %c1_i32 : i32
    %1 = arith.addi %0, %arg1 : i32
    %c0_i32 = arith.constant 0 : i32
    %c0_i32_0 = arith.constant 0 : i32
    return %c0_i32, %1 : i32, i32
  }
  func.func @transform_1(%arg0: i32, %arg1: i32) -> (i32, i32) {
    %c0_i32 = arith.constant 0 : i32
    %c0_i32_0 = arith.constant 0 : i32
    %c0_i32_1 = arith.constant 0 : i32
    return %c0_i32, %c0_i32_0 : i32, i32
  }
  func.func @transform_2(%arg0: i32, %arg1: i32) -> (i32, i32, i32) {
    %c0_i32 = arith.constant 0 : i32
    %c0_i32_0 = arith.constant 0 : i32
    %c0_i32_1 = arith.constant 0 : i32
    return %arg0, %c0_i32, %c0_i32_0 : i32, i32, i32
  }
}

</mosaic_0001>

<llo_original>
// kernel: sub.1
$region0: #{sub.1}
  #allocation4 [shape = 's32[1]{0}', space=sflag, size = 0x4, scoped, tag = 'scoped memory for sub.1']
  %s0 = inlined_call_operand.hbm [shape: f32[2,4,16,16], index: 0, kind: input, shape index: {}]
  %s1 = inlined_call_operand.hbm [shape: f32[2,4,16,16], index: 1, kind: input, shape index: {}]
  %s2 = inlined_call_operand.vmem [shape: f32[2,4,16,16], index: 2, kind: output, shape index: {}]
  $region1: #{sub.1} parent=0
    #allocation0 [shape = 'u8[65536]{0}', space=vmem, size = 0x10000, scoped, tag = 'operand span for operand 0']
    #allocation1 [shape = 's32[1]{0}', space=sflag, size = 0x4, scoped, tag = 'scoped memory for sub.1']
    #allocation2 [shape = 'u8[65536]{0}', space=vmem, size = 0x10000, scoped, tag = 'operand span for operand 1']
    #allocation3 [shape = 's32[1]{0}', space=sflag, size = 0x4, scoped, tag = 'scoped memory for sub.1']
    %3 = vsyncpa [#allocation1], 0
    %4 = vsyncpa [#allocation3], 0
    %s6 = ssub.s32 2048, 2048
    %7 = vsyncadd [#allocation1], %s6
    %s8 = sshll.u32 [#allocation0], 4
    %s9 = int_to_ptr.vmem [resolvable:$true] %s8
    %14 = dma.hbm_to_vmem [thread:$0]  %s0, 2048, %s9, [#allocation1], 128, 128, 8
    %s16 = ssub.s32 2048, 2048
    %17 = vsyncadd [#allocation3], %s16
    %s18 = sshll.u32 [#allocation2], 4
    %s19 = int_to_ptr.vmem [resolvable:$true] %s18
    %24 = dma.hbm_to_vmem [thread:$0]  %s1, 2048, %s19, [#allocation3], 128, 128, 8
    %25 = dma.done [#allocation1], 2048
    %26 = dma.done [#allocation3], 2048
    %v27 = vld [vmem:[#allocation0] sm:$0xff]
    %v28 = vld [vmem:[#allocation2] sm:$0xff]
    %29 = xla_tuple %v27, %v28
    %30 = xla_tuple %29
    %v31 = vsub.f32 %v27, %v28
    %32 = xla_tuple %v31
    %33 = vst [vmem:[%s2] sm:$0xff] %v31
    %s34 = scalar_lea.vmem [#allocation0], 64
    %v35 = vld [vmem:[%s34] sm:$0xff]
    %s36 = scalar_lea.vmem [#allocation2], 64
    %v37 = vld [vmem:[%s36] sm:$0xff]
    %38 = xla_tuple %v35, %v37
    %39 = xla_tuple %38
    %v40 = vsub.f32 %v35, %v37
    %41 = xla_tuple %v40
    %s42 = scalar_lea.vmem %s2, 64
    %43 = vst [vmem:[%s42] sm:$0xff] %v40
    %s44 = scalar_lea.vmem [#allocation0], 16
    %v45 = vld [vmem:[%s44] sm:$0xff]
    %s46 = scalar_lea.vmem [#allocation2], 16
    %v47 = vld [vmem:[%s46] sm:$0xff]
    %48 = xla_tuple %v45, %v47
    %49 = xla_tuple %48
    %v50 = vsub.f32 %v45, %v47
    %51 = xla_tuple %v50
    %s52 = scalar_lea.vmem %s2, 16
    %53 = vst [vmem:[%s52] sm:$0xff] %v50
    %s54 = scalar_lea.vmem [#allocation0], 80
    %v55 = vld [vmem:[%s54] sm:$0xff]
    %s56 = scalar_lea.vmem [#allocation2], 80
    %v57 = vld [vmem:[%s56] sm:$0xff]
    %58 = xla_tuple %v55, %v57
    %59 = xla_tuple %58
    %v60 = vsub.f32 %v55, %v57
    %61 = xla_tuple %v60
    %s62 = scalar_lea.vmem %s2, 80
    %63 = vst [vmem:[%s62] sm:$0xff] %v60
    %s64 = scalar_lea.vmem [#allocation0], 32
    %v65 = vld [vmem:[%s64] sm:$0xff]
    %s66 = scalar_lea.vmem [#allocation2], 32
    %v67 = vld [vmem:[%s66] sm:$0xff]
    %68 = xla_tuple %v65, %v67
    %69 = xla_tuple %68
    %v70 = vsub.f32 %v65, %v67
    %71 = xla_tuple %v70
    %s72 = scalar_lea.vmem %s2, 32
    %73 = vst [vmem:[%s72] sm:$0xff] %v70
    %s74 = scalar_lea.vmem [#allocation0], 96
    %v75 = vld [vmem:[%s74] sm:$0xff]
    %s76 = scalar_lea.vmem [#allocation2], 96
    %v77 = vld [vmem:[%s76] sm:$0xff]
    %78 = xla_tuple %v75, %v77
    %79 = xla_tuple %78
    %v80 = vsub.f32 %v75, %v77
    %81 = xla_tuple %v80
    %s82 = scalar_lea.vmem %s2, 96
    %83 = vst [vmem:[%s82] sm:$0xff] %v80
    %s84 = scalar_lea.vmem [#allocation0], 48
    %v85 = vld [vmem:[%s84] sm:$0xff]
    %s86 = scalar_lea.vmem [#allocation2], 48
    %v87 = vld [vmem:[%s86] sm:$0xff]
    %88 = xla_tuple %v85, %v87
    %89 = xla_tuple %88
    %v90 = vsub.f32 %v85, %v87
    %91 = xla_tuple %v90
    %s92 = scalar_lea.vmem %s2, 48
    %93 = vst [vmem:[%s92] sm:$0xff] %v90
    %s94 = scalar_lea.vmem [#allocation0], 112
    %v95 = vld [vmem:[%s94] sm:$0xff]
    %s96 = scalar_lea.vmem [#allocation2], 112
    %v97 = vld [vmem:[%s96] sm:$0xff]
    %98 = xla_tuple %v95, %v97
    %99 = xla_tuple %98
    %v100 = vsub.f32 %v95, %v97
    %101 = xla_tuple %v100
    %s102 = scalar_lea.vmem %s2, 112
    %103 = vst [vmem:[%s102] sm:$0xff] %v100
    %s104 = scalar_lea.vmem [#allocation0], 8
    %v105 = vld [vmem:[%s104] sm:$0xff]
    %s106 = scalar_lea.vmem [#allocation2], 8
    %v107 = vld [vmem:[%s106] sm:$0xff]
    %108 = xla_tuple %v105, %v107
    %109 = xla_tuple %108
    %v110 = vsub.f32 %v105, %v107
    %111 = xla_tuple %v110
    %s112 = scalar_lea.vmem %s2, 8
    %113 = vst [vmem:[%s112] sm:$0xff] %v110
    %s114 = scalar_lea.vmem [#allocation0], 72
    %v115 = vld [vmem:[%s114] sm:$0xff]
    %s116 = scalar_lea.vmem [#allocation2], 72
    %v117 = vld [vmem:[%s116] sm:$0xff]
    %118 = xla_tuple %v115, %v117
    %119 = xla_tuple %118
    %v120 = vsub.f32 %v115, %v117
    %121 = xla_tuple %v120
    %s122 = scalar_lea.vmem %s2, 72
    %123 = vst [vmem:[%s122] sm:$0xff] %v120
    %s124 = scalar_lea.vmem [#allocation0], 24
    %v125 = vld [vmem:[%s124] sm:$0xff]
    %s126 = scalar_lea.vmem [#allocation2], 24
    %v127 = vld [vmem:[%s126] sm:$0xff]
    %128 = xla_tuple %v125, %v127
    %129 = xla_tuple %128
    %v130 = vsub.f32 %v125, %v127
    %131 = xla_tuple %v130
    %s132 = scalar_lea.vmem %s2, 24
    %133 = vst [vmem:[%s132] sm:$0xff] %v130
    %s134 = scalar_lea.vmem [#allocation0], 88
    %v135 = vld [vmem:[%s134] sm:$0xff]
    %s136 = scalar_lea.vmem [#allocation2], 88
    %v137 = vld [vmem:[%s136] sm:$0xff]
    %138 = xla_tuple %v135, %v137
    %139 = xla_tuple %138
    %v140 = vsub.f32 %v135, %v137
    %141 = xla_tuple %v140
    %s142 = scalar_lea.vmem %s2, 88
    %143 = vst [vmem:[%s142] sm:$0xff] %v140
    %s144 = scalar_lea.vmem [#allocation0], 40
    %v145 = vld [vmem:[%s144] sm:$0xff]
    %s146 = scalar_lea.vmem [#allocation2], 40
    %v147 = vld [vmem:[%s146] sm:$0xff]
    %148 = xla_tuple %v145, %v147
    %149 = xla_tuple %148
    %v150 = vsub.f32 %v145, %v147
    %151 = xla_tuple %v150
    %s152 = scalar_lea.vmem %s2, 40
    %153 = vst [vmem:[%s152] sm:$0xff] %v150
    %s154 = scalar_lea.vmem [#allocation0], 104
    %v155 = vld [vmem:[%s154] sm:$0xff]
    %s156 = scalar_lea.vmem [#allocation2], 104
    %v157 = vld [vmem:[%s156] sm:$0xff]
    %158 = xla_tuple %v155, %v157
    %159 = xla_tuple %158
    %v160 = vsub.f32 %v155, %v157
    %161 = xla_tuple %v160
    %s162 = scalar_lea.vmem %s2, 104
    %163 = vst [vmem:[%s162] sm:$0xff] %v160
    %s164 = scalar_lea.vmem [#allocation0], 56
    %v165 = vld [vmem:[%s164] sm:$0xff]
    %s166 = scalar_lea.vmem [#allocation2], 56
    %v167 = vld [vmem:[%s166] sm:$0xff]
    %168 = xla_tuple %v165, %v167
    %169 = xla_tuple %168
    %v170 = vsub.f32 %v165, %v167
    %171 = xla_tuple %v170
    %s172 = scalar_lea.vmem %s2, 56
    %173 = vst [vmem:[%s172] sm:$0xff] %v170
    %s174 = scalar_lea.vmem [#allocation0], 120
    %v175 = vld [vmem:[%s174] sm:$0xff]
    %s176 = scalar_lea.vmem [#allocation2], 120
    %v177 = vld [vmem:[%s176] sm:$0xff]
    %178 = xla_tuple %v175, %v177
    %179 = xla_tuple %178
    %v180 = vsub.f32 %v175, %v177
    %181 = xla_tuple %v180
    %s182 = scalar_lea.vmem %s2, 120
    %183 = vst [vmem:[%s182] sm:$0xff] %v180
    %184 = vsyncpa [#allocation1], 1
    %185 = vsyncpa [#allocation3], 1

// kernel: distance_transform_loss.1
$region0: #{distance_transform_loss.1}
  #allocation0 [shape = 'u32[]', space=smem, size = 0x4, offset = 0x4, fixed_abs, tag = 'smem constant byte address 0x4 - core index']
  #allocation1 [shape = 'u32[144,128]{1,0:T(1,128)}', space=vmem, size = 0x12000, scoped, tag = 'internal scratch']
  #allocation2 [shape = 'f32[4,256]{1,0:T(4,128)}', space=vmem, size = 0x1000, scoped, tag = 'scratch operand']
  %s0 = inlined_call_operand.vmem [shape: f32[36,512], index: 0, kind: input, shape index: {}]
  %s1 = inlined_call_operand.vmem [shape: f32[4,36], index: 1, kind: input, shape index: {}]
  %s2 = inlined_call_operand.vmem [shape: f32[2,1,1], index: 2, kind: output, shape index: {}]
  %s3 = sld [smem:[#allocation0]]
  $region72: #{distance_transform_loss.1} parent=0
    _
  %s5 = ssub.s32 1, %s3
  %s6 = scalar_select 0, %s5, %s3
  $region1: #{distance_transform_loss.1} parent=0
    #allocation3 [shape = 'u8[81920]{0}', space=vmem, size = 0x14000, scoped, tag = 'input window, operand 0']
    loop: start=0, step=1, limit=4
    $region2: #{distance_transform_loss.1} parent=1 // loop_pre_header
      _
    $region3: #{distance_transform_loss.1} parent=1 // loop_header
      %s8 = sphi 0, %s12
      %p9 = scmp.ge.s32.totalorder %s8, 4
      %s15 = sphi 0, %s27
      %s16 = sphi 0, %s23
      %s17 = sphi 0, %s15
      %s18 = sphi 0, %s16
      %s19 = sphi 0, %s17
      %s20 = sphi 0, %s18
      %s32 = sphi 0, %s34
      %s35 = sphi 0, %s32
      %s36 = sphi 0, %s35
      %s52 = sphi 0, %s36
      %s56 = sphi 0, %s56
      %s58 = sphi 0, %s56
      %s59 = sphi 0, %s58
      %s73 = sphi 0, %s59
      %s79 = sphi 0, %s81
      %s82 = sphi 0, %s79
      %s83 = sphi 0, %s82
      %s99 = sphi 0, %s83
    $region4: #{distance_transform_loss.1} parent=1 // loop_header_branch
      %11 = sbr.rel (%p9) target = $region8
    $region5: #{distance_transform_loss.1} parent=1 // loop_body
      %s13 = ssub.s32 %s8, 1
      %s14 = ssub.s32 %s8, 2
      %s21 = sadd.s32 1, %s16
      %p22 = scmp.ge.s32.totalorder %s21, 1
      %s23 = scalar_select %p22, 0, %s21
      %s24 = sadd.s32 1, %s15
      %s25 = scalar_select %p22, %s24, %s15
      %p26 = scmp.ge.s32.totalorder %s25, 2
      %s27 = scalar_select %p26, 0, %s25
      %s28 = sadd.s32 %s15, %s16
      %s29 = sadd.s32 %s27, %s23
      %s30 = ssub.s32 %s28, %s29
      %p31 = scmp.eq.s32.totalorder %s30, 0
      %s33 = sadd.s32 %s32, 1
      %s34 = scalar_select %p31, %s32, %s33
      %p37 = pneg %p31
      %p38 = scmp.eq.s32.totalorder %s8, 1
      %p39 = por %p37, %p38
      %p40 = scmp.ne.s32.totalorder %s32, %s35
      %p41 = scmp.eq.s32.totalorder %s8, 0
      %p42 = por %p40, %p41
      %p43 = scmp.ne.s32.totalorder %s32, %s35
      %p44 = scmp.eq.s32.totalorder %s13, 1
      %p45 = por %p43, %p44
      %p46 = scmp.ne.s32.totalorder %s35, %s36
      %p47 = scmp.eq.s32.totalorder %s13, 0
      %p48 = por %p46, %p47
      %p49 = scmp.ne.s32.totalorder %s35, %s36
      %p50 = scmp.eq.s32.totalorder %s14, 1
      %p51 = por %p49, %p50
      %p53 = scmp.ne.s32.totalorder %s36, %s52
      %p54 = scmp.eq.s32.totalorder %s14, 0
      %p55 = por %p53, %p54
      %s57 = sadd.s32 %s56, 1
      %p60 = scmp.eq.s32.totalorder %s8, 1
      %p61 = scmp.ne.s32.totalorder %s56, %s58
      %p62 = scmp.eq.s32.totalorder %s8, 0
      %p63 = por %p61, %p62
      %p64 = scmp.ne.s32.totalorder %s56, %s58
      %p65 = scmp.eq.s32.totalorder %s13, 1
      %p66 = por %p64, %p65
      %p67 = scmp.ne.s32.totalorder %s58, %s59
      %p68 = scmp.eq.s32.totalorder %s13, 0
      %p69 = por %p67, %p68
      %p70 = scmp.ne.s32.totalorder %s58, %s59
      %p71 = scmp.eq.s32.totalorder %s14, 1
      %p72 = por %p70, %p71
      %p74 = scmp.ne.s32.totalorder %s59, %s73
      %p75 = scmp.eq.s32.totalorder %s14, 0
      %p76 = por %p74, %p75
      %s77 = ssub.s32 %s15, %s27
      %p78 = scmp.eq.s32.totalorder %s77, 0
      %s80 = sadd.s32 %s79, 1
      %s81 = scalar_select %p78, %s79, %s80
      %p84 = pneg %p78
      %p85 = scmp.eq.s32.totalorder %s8, 1
      %p86 = por %p84, %p85
      %p87 = scmp.ne.s32.totalorder %s79, %s82
      %p88 = scmp.eq.s32.totalorder %s8, 0
      %p89 = por %p87, %p88
      %p90 = scmp.ne.s32.totalorder %s79, %s82
      %p91 = scmp.eq.s32.totalorder %s13, 1
      %p92 = por %p90, %p91
      %p93 = scmp.ne.s32.totalorder %s82, %s83
      %p94 = scmp.eq.s32.totalorder %s13, 0
      %p95 = por %p93, %p94
      %p96 = scmp.ne.s32.totalorder %s82, %s83
      %p97 = scmp.eq.s32.totalorder %s14, 1
      %p98 = por %p96, %p97
      %p100 = scmp.ne.s32.totalorder %s83, %s99
      %p101 = scmp.eq.s32.totalorder %s14, 0
      %p102 = por %p100, %p101
      %p103 = scmp.le.s32.totalorder 1, %s8
      %p104 = scmp.lt.s32.totalorder %s8, 3
      %p105 = pnand %p103, %p104
      %p106 = pneg %p105
      // Predicated region
      $region9: #{distance_transform_loss.1} parent=5 // pred_check
        _
      $region10: #{distance_transform_loss.1} parent=5 // pred_check_branch
        %108 = sbr.rel (%p105) target = $region12
      $region11: #{distance_transform_loss.1} parent=5 // pred_region
        %s109 = ssub.s32 %s8, 1
        // Predicated region
        $region13: #{distance_transform_loss.1} parent=11 // pred_check
          %p110 = pneg %p69
        $region14: #{distance_transform_loss.1} parent=11 // pred_check_branch
          %112 = sbr.rel (%p110) target = $region16
        $region15: #{distance_transform_loss.1} parent=11 // pred_region
          _
        $region16: #{distance_transform_loss.1} parent=11 // pred_fallthru
          _
      $region12: #{distance_transform_loss.1} parent=5 // pred_fallthru
        _
      %p113 = scmp.lt.s32.totalorder %s8, 2
      // Predicated region
      $region17: #{distance_transform_loss.1} parent=5 // pred_check
        %p114 = pneg %p113
      $region18: #{distance_transform_loss.1} parent=5 // pred_check_branch
        %116 = sbr.rel (%p114) target = $region20
      $region19: #{distance_transform_loss.1} parent=5 // pred_region
        // Predicated region
        $region21: #{distance_transform_loss.1} parent=19 // pred_check
          %p117 = pneg %p42
        $region22: #{distance_transform_loss.1} parent=19 // pred_check_branch
          %119 = sbr.rel (%p117) target = $region24
        $region23: #{distance_transform_loss.1} parent=19 // pred_region
          %s120 = sand.u32 %s32, 1
          %s121 = sand.u32 %s32, 1
          %s122 = smul.addr %s121, 80
          %s123 = scalar_lea.vmem [#allocation3], %s122
          %s124 = sadd.s32 %s15, %s16
          %s125 = smul.u32 2, %s124
          %s126 = smul.addr %s125, 8
          %s127 = scalar_lea.vmem %s0, %s126
          // Predicated region
          $region25: #{distance_transform_loss.1} parent=23 // pred_check
            _
          $region26: #{distance_transform_loss.1} parent=23 // pred_check_branch
            %129 = sbr.rel (0) target = $region28
          $region27: #{distance_transform_loss.1} parent=23 // pred_region
            // Predicated region
            $region29: #{distance_transform_loss.1} parent=27 // pred_check
              _
            $region30: #{distance_transform_loss.1} parent=27 // pred_check_branch
              %131 = sbr.rel (0) target = $region32
            $region31: #{distance_transform_loss.1} parent=27 // pred_region
              loop: start=0, step=1, limit=1
              $region33: #{distance_transform_loss.1} parent=31 // loop_pre_header
                _
              $region34: #{distance_transform_loss.1} parent=31 // loop_header
                %s133 = sphi 0, %s137
                %p134 = scmp.ge.s32.totalorder %s133, 1
                %s138 = sphi %s127, %s127
                %s139 = sphi %s123, %s123
              $region35: #{distance_transform_loss.1} parent=31 // loop_header_branch
                %136 = sbr.rel (%p134) target = $region39
              $region36: #{distance_transform_loss.1} parent=31 // loop_body
                %v140 = vld [vmem:[%s138] sm:$0xff]
                %141 = vst [vmem:[%s139] sm:$0xff] %v140
                %v142 = vld [vmem:[%s138 + $0x8] sm:$0xff]
                %143 = vst [vmem:[%s139 + $0x8] sm:$0xff] %v142
                %v144 = vld [vmem:[%s138 + $0x20] sm:$0xff]
                %145 = vst [vmem:[%s139 + $0x10] sm:$0xff] %v144
                %v146 = vld [vmem:[%s138 + $0x28] sm:$0xff]
                %147 = vst [vmem:[%s139 + $0x18] sm:$0xff] %v146
                %v148 = vld [vmem:[%s138 + $0x40] sm:$0xff]
                %149 = vst [vmem:[%s139 + $0x20] sm:$0xff] %v148
                %v150 = vld [vmem:[%s138 + $0x48] sm:$0xff]
                %151 = vst [vmem:[%s139 + $0x28] sm:$0xff] %v150
                %v152 = vld [vmem:[%s138 + $0x60] sm:$0xff]
                %153 = vst [vmem:[%s139 + $0x30] sm:$0xff] %v152
                %v154 = vld [vmem:[%s138 + $0x68] sm:$0xff]
                %155 = vst [vmem:[%s139 + $0x38] sm:$0xff] %v154
                %v156 = vld [vmem:[%s138 + $0x80] sm:$0xff]
                %157 = vst [vmem:[%s139 + $0x40] sm:$0xff] %v156
                %v158 = vld [vmem:[%s138 + $0x88] sm:$0xff]
                %159 = vst [vmem:[%s139 + $0x48] sm:$0xff] %v158
              $region37: #{distance_transform_loss.1} parent=31 // loop_footer
                %s137 = sadd.s32 1, %s133
              $region38: #{distance_transform_loss.1} parent=31 // loop_footer_branch
                %132 = sbr.rel target = $region34
              $region39: #{distance_transform_loss.1} parent=31 // loop_exit
                _
            $region32: #{distance_transform_loss.1} parent=27 // pred_fallthru
              _
            // Predicated region
            $region40: #{distance_transform_loss.1} parent=27 // pred_check
              _
            $region41: #{distance_transform_loss.1} parent=27 // pred_check_branch
              %161 = sbr.rel target = $region43
            $region42: #{distance_transform_loss.1} parent=27 // pred_region
              _
            $region43: #{distance_transform_loss.1} parent=27 // pred_fallthru
              _
          $region28: #{distance_transform_loss.1} parent=23 // pred_fallthru
            _
          %162 = vnop
        $region24: #{distance_transform_loss.1} parent=19 // pred_fallthru
          _
      $region20: #{distance_transform_loss.1} parent=5 // pred_fallthru
        _
      %p163 = scmp.le.s32.totalorder 1, %s8
      %p164 = scmp.lt.s32.totalorder %s8, 3
      %p165 = pnand %p163, %p164
      %p166 = pneg %p165
      // Predicated region
      $region44: #{distance_transform_loss.1} parent=5 // pred_check
        _
      $region45: #{distance_transform_loss.1} parent=5 // pred_check_branch
        %168 = sbr.rel (%p165) target = $region47
      $region46: #{distance_transform_loss.1} parent=5 // pred_region
        %s169 = ssub.s32 %s8, 1
        %s170 = sand.u32 %s35, 1
        %s171 = sand.u32 %s35, 1
        %s172 = smul.addr %s171, 80
        %s173 = scalar_lea.vmem [#allocation3], %s172
        // Predicated region
        $region48: #{distance_transform_loss.1} parent=46 // pred_check
          %p174 = pneg %p48
        $region49: #{distance_transform_loss.1} parent=46 // pred_check_branch
          %176 = sbr.rel (%p174) target = $region51
        $region50: #{distance_transform_loss.1} parent=46 // pred_region
          _
        $region51: #{distance_transform_loss.1} parent=46 // pred_fallthru
          _
        %s177 = sand.u32 %s35, 1
        %s178 = sand.u32 %s35, 1
        %s179 = smul.addr %s178, 80
        %s180 = scalar_lea.vmem [#allocation3], %s179
        %p181 = pneg %p48
        %p182 = pneg %p45
        %p183 = pneg %p69
        %p184 = pneg %p66
        %p185 = pneg %p95
        %p186 = pneg %p92
        %p187 = scmp.lt.s32.totalorder %s17, 1
        %s188 = scalar_select %p187, %s17, 1
        %s189 = scalar_lea.vmem %s2, %s188
        %s190 = sadd.s32 %s17, %s18
        %s191 = smul.u32 2, %s190
        %p192 = scmp.lt.s32.totalorder %s17, 1
        %s193 = scalar_select %p192, %s17, 1
        %s194 = scalar_lea.vmem %s2, %s193
        %p195 = scmp.eq.s32.totalorder %s18, 0
        // Predicated region
        $region52: #{distance_transform_loss.1} parent=46 // pred_check
          %p196 = pneg %p195
        $region53: #{distance_transform_loss.1} parent=46 // pred_check_branch
          %198 = sbr.rel (%p196) target = $region55
        $region54: #{distance_transform_loss.1} parent=46 // pred_region
          %199 = vst [vmem:[#allocation2] sm:$0xff] 0.0
        $region55: #{distance_transform_loss.1} parent=46 // pred_fallthru
          _
        %v200 = vld [vmem:[%s1] sm:$0xf]
        %v201 = vld [vmem:[%s173] sm:$0xff]
        %v202 = vld [vmem:[%s173 + $0x8] sm:$0xff]
        %v203 = vld [vmem:[%s173 + $0x10] sm:$0xff]
        %v204 = vld [vmem:[%s173 + $0x18] sm:$0xff]
        %v205 = vld [vmem:[%s173 + $0x20] sm:$0xff]
        %v206 = vld [vmem:[%s173 + $0x28] sm:$0xff]
        %v207 = vld [vmem:[%s173 + $0x30] sm:$0xff]
        %v208 = vld [vmem:[%s173 + $0x38] sm:$0xff]
        %v209 = vld [vmem:[%s173 + $0x40] sm:$0xf]
        %v210 = vld [vmem:[%s173 + $0x48] sm:$0xf]
        %vm211 = vcmask 293888
        %v213 = vsel %vm211, %v200, 0
        %vm215 = vcmask 1043456
        %v217 = vsel %vm215, %v209, 0
        %v220 = vsel %vm215, %v210, 0
        %222 = vmatprep.subr.mxu0 0.0
        %223 = vmatpush1.msra.mxu0 0.0
        %224 = vmatprep.subr.mxu0 0.0
        %225 = vmatpush1.msra.mxu0 0.0
        %226 = vmatprep.subr.mxu0 0.0
        %227 = vmatpush1.msra.mxu0 0.0
        %228 = vmatprep.subr.mxu0 0.0
        %229 = vmatpush1.msra.mxu0 0.0
        %230 = vmatprep.subr.mxu0 0.0
        %231 = vmatpush1.msra.mxu0 0.0
        %232 = vmatprep.subr.mxu0 0.0
        %233 = vmatpush1.msra.mxu0 0.0
        %234 = vmatprep.subr.mxu0 0.0
        %235 = vmatpush1.msra.mxu0 0.0
        %236 = vmatprep.subr.mxu0 0.0
        %237 = vmatpush1.msra.mxu0 0.0
        %238 = vmatprep.subr.mxu0 0.0
        %239 = vmatpush1.msra.mxu0 0.0
        %240 = vmatprep.subr.mxu0 0.0
        %241 = vmatpush1.msra.mxu0 0.0
        %242 = vmatprep.subr.mxu0 0.0
        %243 = vmatpush1.msra.mxu0 0.0
        %244 = vmatprep.subr.mxu0 %v220
        %245 = vmatpush1.msra.mxu0 %v217
        %246 = vmatprep.subr.mxu0 %v208
        %247 = vmatpush1.msra.mxu0 %v207
        %248 = vmatprep.subr.mxu0 %v206
        %249 = vmatpush1.msra.mxu0 %v205
        %250 = vmatprep.subr.mxu0 %v204
        %251 = vmatpush1.msra.mxu0 %v203
        %252 = vmatprep.subr.mxu0 %v202
        %253 = vmatpush1.msra.mxu0 %v201
        %254 = vmatprep.subr.mxu0 0.0
        %255 = vmatpush2.msra.mxu0 0.0
        %256 = vmatprep.subr.mxu0 0.0
        %257 = vmatpush2.msra.mxu0 0.0
        %258 = vmatprep.subr.mxu0 0.0
        %259 = vmatpush2.msra.mxu0 0.0
        %260 = vmatprep.subr.mxu0 0.0
        %261 = vmatpush2.msra.mxu0 0.0
        %262 = vmatprep.subr.mxu0 0.0
        %263 = vmatpush2.msra.mxu0 0.0
        %264 = vmatprep.subr.mxu0 0.0
        %265 = vmatpush2.msra.mxu0 0.0
        %266 = vmatprep.subr.mxu0 0.0
        %267 = vmatpush2.msra.mxu0 0.0
        %268 = vmatprep.subr.mxu0 0.0
        %269 = vmatpush2.msra.mxu0 0.0
        %270 = vmatprep.subr.mxu0 0.0
        %271 = vmatpush2.msra.mxu0 0.0
        %272 = vmatprep.subr.mxu0 0.0
        %273 = vmatpush2.msra.mxu0 0.0
        %274 = vmatprep.subr.mxu0 0.0
        %275 = vmatpush2.msra.mxu0 0.0
        %276 = vmatprep.subr.mxu0 0.0
        %277 = vmatpush2.msra.mxu0 0.0
        %278 = vmatprep.subr.mxu0 0.0
        %279 = vmatpush2.msra.mxu0 0.0
        %280 = vmatprep.subr.mxu0 0.0
        %281 = vmatpush2.msra.mxu0 0.0
        %282 = vmatprep.subr.mxu0 0.0
        %283 = vmatpush2.msra.mxu0 0.0
        %284 = vmatprep.subr.mxu0 0.0
        %285 = vmatpush2.msra.mxu0 0.0
        %286 = vmatprep.mubr.f32.mxu0 0.0
        %287 = vmatmul.mubr.f32.gmra.mxu0 %v213
        %v288 = vpop.f32.mrf.mxu0
        %v289 = vadd.f32 0.0, %v288
        %v290 = vpop.f32.mrf.mxu0
        %v291 = vadd.f32 0.0, %v290
        %292 = vdwg.mxu0
        %v293 = vld [vmem:[#allocation2] sm:$0xff]
        %v294 = vmul.f32 %v289, %v289
        %v295 = vmul.f32 %v291, %v291
        %v298 = vcombine.low %v294, %v295
        %v300 = vadd.f32 %v293, %v298
        %301 = vst [vmem:[#allocation2] sm:$0xff] %v300
        // Predicated region
        $region56: #{distance_transform_loss.1} parent=46 // pred_check
          %p302 = pneg %p195
        $region57: #{distance_transform_loss.1} parent=46 // pred_check_branch
          %304 = sbr.rel (%p302) target = $region59
        $region58: #{distance_transform_loss.1} parent=46 // pred_region
          %v305 = vld [vmem:[#allocation2] sm:$0xff]
          %v307 = vcombine.high %v305, %v305
          %v309 = vsel %vm215, %v305, 0.0
          %v310 = vsel %vm215, %v307, 0.0
          %v311 = vadd.f32 %v309, %v310
          %312 = vadd.xlane.f32.xlu0 %v311
          %v313 = vpop.xlane.xlu0 %312
          %v314 = vrot.slane %v313, 4
          %v315 = vadd.f32 %v313, %v314
          %v316 = vrot.slane %v315, 2
          %v317 = vadd.f32 %v315, %v316
          %v318 = vrot.slane %v317, 1
          %v319 = vadd.f32 %v317, %v318
          %s320 = vtos %v319
          %v321 = vstv %s320
          %vm322 = vcmask 0
          %323 = vst.msk [vmem:[%s194] sm:$0x1] %vm322, %v321
        $region59: #{distance_transform_loss.1} parent=46 // pred_fallthru
          _
        %p324 = scmp.lt.s32.totalorder %s17, 1
        %s325 = scalar_select %p324, %s17, 1
        %s326 = scalar_lea.vmem %s2, %s325
        // Predicated region
        $region60: #{distance_transform_loss.1} parent=46 // pred_check
          %p327 = pneg %p92
        $region61: #{distance_transform_loss.1} parent=46 // pred_check_branch
          %329 = sbr.rel (%p327) target = $region63
        $region62: #{distance_transform_loss.1} parent=46 // pred_region
          _
        $region63: #{distance_transform_loss.1} parent=46 // pred_fallthru
          _
      $region47: #{distance_transform_loss.1} parent=5 // pred_fallthru
        _
      %p330 = scmp.le.s32.totalorder 2, %s8
      // Predicated region
      $region64: #{distance_transform_loss.1} parent=5 // pred_check
        %p331 = pneg %p330
      $region65: #{distance_transform_loss.1} parent=5 // pred_check_branch
        %333 = sbr.rel (%p331) target = $region67
      $region66: #{distance_transform_loss.1} parent=5 // pred_region
        %s334 = ssub.s32 %s8, 2
        // Predicated region
        $region68: #{distance_transform_loss.1} parent=66 // pred_check
          %p335 = pneg %p98
        $region69: #{distance_transform_loss.1} parent=66 // pred_check_branch
          %337 = sbr.rel (%p335) target = $region71
        $region70: #{distance_transform_loss.1} parent=66 // pred_region
          %p338 = scmp.lt.s32.totalorder %s19, 1
          %s339 = scalar_select %p338, %s19, 1
          %s340 = scalar_lea.vmem %s2, %s339
        $region71: #{distance_transform_loss.1} parent=66 // pred_fallthru
          _
      $region67: #{distance_transform_loss.1} parent=5 // pred_fallthru
        _
    $region6: #{distance_transform_loss.1} parent=1 // loop_footer
      %s12 = sadd.s32 1, %s8
    $region7: #{distance_transform_loss.1} parent=1 // loop_footer_branch
      %7 = sbr.rel target = $region3
    $region8: #{distance_transform_loss.1} parent=1 // loop_exit
      _

</llo_original>
